<compile_context>
chip_gen: v7x
topology: tpu7x:2x2x1
jax: 0.10.0
libtpu: 0.0.40
codegen_flags: <defaults>
</compile_context>

<pallas_src>
import jax
import jax.numpy as jnp
from jax.experimental import pallas as pl
from jax.experimental.pallas import tpu as pltpu


# ---------------------------------------------------------------------------
# Kernel: n_img_features = permute(imgs * scale + shift, (0, 2, 1))
# ---------------------------------------------------------------------------
def vqg_recast_fma_kernel(img_ref, scale_ref, shift_ref, out_ref):
    # img_ref:   (bb, C, L)  raw (B,C,L) layout, straight from HBM
    # scale_ref: (bb, 1, C)  per-image scale row (f32)
    # shift_ref: (bb, 1, C)  per-image shift row (f32)
    # out_ref:   (bb, L, C)  n_img_features (lane-dense C)
    img = jnp.swapaxes(img_ref[...].astype(jnp.float32), 1, 2)   # (bb, L, C) XLU permute
    out = img * scale_ref[...] + shift_ref[...]                  # VPU FMA, broadcast over L
    out_ref[...] = out.astype(out_ref.dtype)


# ---------------------------------------------------------------------------
# Hardware query / tiling heuristics
# ---------------------------------------------------------------------------
def _tpu_hw():
    """Returns (physical_vmem_bytes, tensorcores_per_device) with safe fallbacks."""
    vmem = 64 << 20          # v7x per-TC VMEM; safe lower bound on every generation
    cores = 1
    try:
        info = pltpu.get_tpu_info()
        vmem = int(getattr(info, "vmem_capacity_bytes", vmem))
        for attr in ("num_tensorcores", "tensorcores_per_chip",
                     "num_cores", "cores_per_chip"):
            v = getattr(info, attr, None)
            if v:
                cores = max(cores, int(v))
                break
    except Exception:
        pass
    try:
        kind = jax.devices()[0].device_kind.lower()
        if any(t in kind for t in ("v7", "7x", "v4", "v3")):
            cores = max(cores, 2)
    except Exception:
        pass
    return vmem, cores


def _choose_block_b(B, C, L, in_itemsize, out_itemsize, *, n_cores,
                    vmem_budget_bytes, target_in_tile_bytes=6 << 20):
    """Images per grid step, sized by bytes (not rows)."""
    per_img_in = C * L * in_itemsize
    per_img_out = C * L * out_itemsize

    def vmem_for(bb):
        # double-buffered in/out tiles + (small) f32 scale/shift tiles
        # + in-kernel f32 transpose/compute intermediates
        return (2 * bb * (per_img_in + per_img_out)
                + 2 * 2 * bb * C * 4
                + 2 * bb * C * L * 4)

    if vmem_for(B) <= vmem_budget_bytes:
        bb = B                                       # whole tensor in one tile, grid=(1,)
    else:
        bb = max(1, min(B, target_in_tile_bytes // per_img_in))
        while bb > 1 and vmem_for(bb) > vmem_budget_bytes:
            bb = max(1, bb // 2)

    # Megacore (2 TCs, e.g. v7x): keep >= n_cores grid steps, but only if the
    # split tile still carries >= ~1 MiB of input (otherwise per-step overhead wins).
    if n_cores > 1 and B >= n_cores:
        bb_mc = pl.cdiv(B, n_cores)
        if bb_mc * per_img_in >= (1 << 20):
            bb = min(bb, bb_mc)
    return max(1, bb)


# ---------------------------------------------------------------------------
# Params / forward
# ---------------------------------------------------------------------------
def fuse_scale_shift_params(params):
    """One-time prep: fuse the CategoryEncoder scale/shift heads into one GEMM."""
    fused = dict(params)
    fused["W_ss"] = jnp.concatenate([params["W_scale"], params["W_shift"]], axis=1)  # (H, 2C)
    fused["b_ss"] = jnp.concatenate([params["b_scale"], params["b_shift"]], axis=0)  # (2C,)
    return fused


def vqgnet_forward(imgs, cats, params, *, block_b=None, out_dtype=None):
    """Forward of VQGNet (scale_shift=True, lstm branch) up to n_img_features.

    imgs: (B, C, L) float   -- squeezed image features (as after imgs.squeeze())
    cats: (B,) int32        -- category indices
    returns n_img_features: (B, L, C)
    """
    B, C, L = imgs.shape
    out_dtype = imgs.dtype if out_dtype is None else out_dtype

    # --- hoisted CategoryEncoder scale/shift heads: one (B,H)@(H,2C) GEMM ---
    emb = params["cat_embedding"][cats].astype(jnp.float32)          # (B, H) gather glue
    if "W_ss" in params:                                              # fused once at setup
        w_ss, b_ss = params["W_ss"], params["b_ss"]
    else:                                                             # fallback path
        w_ss = jnp.concatenate([params["W_scale"], params["W_shift"]], axis=1)
        b_ss = jnp.concatenate([params["b_scale"], params["b_shift"]], axis=0)
    ss = emb @ w_ss.astype(jnp.float32) + b_ss.astype(jnp.float32)    # (B, 2C) f32
    scale = ss[:, :C].reshape(B, 1, C)
    shift = ss[:, C:].reshape(B, 1, C)

    vmem_phys, n_cores = _tpu_hw()
    vmem_limit = (vmem_phys * 3) // 4                 # headroom for compiler scratch
    if block_b is None:
        block_b = _choose_block_b(
            B, C, L,
            jnp.dtype(imgs.dtype).itemsize, jnp.dtype(out_dtype).itemsize,
            n_cores=n_cores, vmem_budget_bytes=(vmem_limit * 3) // 5)
    grid = (pl.cdiv(B, block_b),)                     # edge blocks OK: elementwise kernel

    out = pl.pallas_call(
        vqg_recast_fma_kernel,
        out_shape=jax.ShapeDtypeStruct((B, L, C), out_dtype),
        grid=grid,
        in_specs=[
            pl.BlockSpec((block_b, C, L), lambda b: (b, 0, 0)),   # raw (B,C,L) layout
            pl.BlockSpec((block_b, 1, C), lambda b: (b, 0, 0)),   # scale rows (f32)
            pl.BlockSpec((block_b, 1, C), lambda b: (b, 0, 0)),   # shift rows (f32)
        ],
        out_specs=pl.BlockSpec((block_b, L, C), lambda b: (b, 0, 0)),
        compiler_params=pltpu.CompilerParams(
            dimension_semantics=("parallel",),        # batch axis -> both TCs on v7x
            vmem_limit_bytes=vmem_limit,
        ),
    )(imgs, scale, shift)

    # TODO(synk): LSTM_Decoder / CategoryEncoder source is not included in the
    # reference module; the caption decoder (preds, alphas) is not implemented.
    return out


def vqgnet_reference(imgs, cats, params):
    """Pure-JAX reference of get_img_embeds (mirrors the PyTorch code)."""
    emb = params["cat_embedding"][cats].astype(jnp.float32)         # (B, H)
    scale = emb @ params["W_scale"] + params["b_scale"]             # (B, C)
    shift = emb @ params["W_shift"] + params["b_shift"]             # (B, C)
    n_img = imgs.astype(jnp.float32) * scale[:, :, None] + shift[:, :, None]  # (B, C, L)
    return jnp.transpose(n_img, (0, 2, 1)).astype(imgs.dtype)       # (B, L, C)


if __name__ == "__main__":
    # Small shapes consistent with the module (encoder_dim shrunk from 2048):
    B = 2                # batch
    C = 256              # encoder_dim (feature channels) -- lane-dense (multiple of 128)
    L = 16               # img_feat_size (flattened spatial positions)
    H = 32               # cat_hidden_size
    NUM_CATEGORIES = 16
    SEQ = 8              # caption length (unused: decoder not translatable)

    key = jax.random.PRNGKey(0)
    k_img, k_emb, k_ws, k_wb, k_cat, k_cap = jax.random.split(key, 6)

    imgs = jax.random.normal(k_img, (B, C, L), dtype=jnp.float32)
    cats = jax.random.randint(k_cat, (B,), 0, NUM_CATEGORIES, dtype=jnp.int32)
    captions = jax.random.randint(k_cap, (B, SEQ), 0, 100, dtype=jnp.int32)  # unused

    params = {
        "cat_embedding": jax.random.normal(k_emb, (NUM_CATEGORIES, H), jnp.float32) * 0.1,
        "W_scale": jax.random.normal(k_ws, (H, C), jnp.float32) * 0.1,
        "b_scale": jnp.ones((C,), jnp.float32),
        "W_shift": jax.random.normal(k_wb, (H, C), jnp.float32) * 0.1,
        "b_shift": jnp.zeros((C,), jnp.float32),
    }
    params = fuse_scale_shift_params(params)   # one-time fusion, out of the call path

    out = vqgnet_forward(imgs, cats, params)
    out = jax.block_until_ready(out)

    ref = vqgnet_reference(imgs, cats, params)
    assert out.shape == (B, L, C)
    assert jnp.allclose(out, ref, atol=1e-5, rtol=1e-5)

    print("KERNEL_OK")
</pallas_src>

<mosaic_0001>
module attributes {stable_mosaic.version = 11 : i64} {
  func.func @vqg_recast_fma_kernel(%arg0: i32, %arg1: memref<2x256x16xf32, #tpu.memory_space<vmem>>, %arg2: memref<2x1x256xf32, #tpu.memory_space<vmem>>, %arg3: memref<2x1x256xf32, #tpu.memory_space<vmem>>, %arg4: memref<2x16x256xf32, #tpu.memory_space<vmem>>) attributes {dimension_semantics = [#tpu.dimension_semantics<parallel>], iteration_bounds = array<i64: 1>, scalar_prefetch = 0 : i64, scratch_operands = 0 : i64, tpu.core_type = #tpu.core_type<tc>, window_params = [{transform_indices = @transform_0, window_bounds = array<i64: 2, 256, 16>}, {transform_indices = @transform_1, window_bounds = array<i64: 2, 1, 256>}, {transform_indices = @transform_2, window_bounds = array<i64: 2, 1, 256>}, {transform_indices = @transform_3, window_bounds = array<i64: 2, 16, 256>}]} {
    %c0 = arith.constant 0 : index
    %c0_0 = arith.constant 0 : index
    %c0_1 = arith.constant 0 : index
    %0 = vector.load %arg1[%c0, %c0_0, %c0_1] : memref<2x256x16xf32, #tpu.memory_space<vmem>>, vector<2x256x16xf32>
    %1 = tpu.transpose %0, [0, 2, 1] : vector<2x256x16xf32> -> vector<2x16x256xf32>
    %c0_2 = arith.constant 0 : index
    %c0_3 = arith.constant 0 : index
    %c0_4 = arith.constant 0 : index
    %2 = vector.load %arg2[%c0_2, %c0_3, %c0_4] : memref<2x1x256xf32, #tpu.memory_space<vmem>>, vector<2x1x256xf32>
    %3 = vector.broadcast %2 : vector<2x1x256xf32> to vector<2x16x256xf32>
    %4 = arith.mulf %1, %3 : vector<2x16x256xf32>
    %c0_5 = arith.constant 0 : index
    %c0_6 = arith.constant 0 : index
    %c0_7 = arith.constant 0 : index
    %5 = vector.load %arg3[%c0_5, %c0_6, %c0_7] : memref<2x1x256xf32, #tpu.memory_space<vmem>>, vector<2x1x256xf32>
    %6 = vector.broadcast %5 : vector<2x1x256xf32> to vector<2x16x256xf32>
    %7 = arith.addf %4, %6 : vector<2x16x256xf32>
    %c0_8 = arith.constant 0 : index
    %c0_9 = arith.constant 0 : index
    %c0_10 = arith.constant 0 : index
    %8 = vector.load %arg4[%c0_8, %c0_9, %c0_10] : memref<2x16x256xf32, #tpu.memory_space<vmem>>, vector<2x16x256xf32>
    tpu.vector_store %arg4[%c0_8, %c0_9, %c0_10], %7 {strides = array<i32>} : memref<2x16x256xf32, #tpu.memory_space<vmem>>, vector<2x16x256xf32>,
    return
  }
  func.func @transform_0(%arg0: i32) -> (i32, i32, i32) {
    %c0_i32 = arith.constant 0 : i32
    %c0_i32_0 = arith.constant 0 : i32
    %c0_i32_1 = arith.constant 0 : i32
    return %arg0, %c0_i32, %c0_i32_0 : i32, i32, i32
  }
  func.func @transform_1(%arg0: i32) -> (i32, i32, i32) {
    %c0_i32 = arith.constant 0 : i32
    %c0_i32_0 = arith.constant 0 : i32
    %c0_i32_1 = arith.constant 0 : i32
    return %arg0, %c0_i32, %c0_i32_0 : i32, i32, i32
  }
  func.func @transform_2(%arg0: i32) -> (i32, i32, i32) {
    %c0_i32 = arith.constant 0 : i32
    %c0_i32_0 = arith.constant 0 : i32
    %c0_i32_1 = arith.constant 0 : i32
    return %arg0, %c0_i32, %c0_i32_0 : i32, i32, i32
  }
  func.func @transform_3(%arg0: i32) -> (i32, i32, i32) {
    %c0_i32 = arith.constant 0 : i32
    %c0_i32_0 = arith.constant 0 : i32
    %c0_i32_1 = arith.constant 0 : i32
    return %arg0, %c0_i32, %c0_i32_0 : i32, i32, i32
  }
}

</mosaic_0001>

<llo_original>
// kernel: tpu_custom_call.1
$region0: #{tpu_custom_call.1}
  #allocation0 [shape = 'u32[]', space=smem, size = 0x4, offset = 0x4, fixed_abs, tag = 'smem constant byte address 0x4 - core index']
  #allocation1 [shape = 'u32[144,128]{1,0:T(1,128)}', space=vmem, size = 0x12000, scoped, tag = 'internal scratch']
  %s0 = inlined_call_operand.vmem [shape: f32[2,256,16], index: 0, kind: input, shape index: {}]
  %s1 = inlined_call_operand.vmem [shape: f32[2,1,256], index: 1, kind: input, shape index: {}]
  %s2 = inlined_call_operand.vmem [shape: f32[2,1,256], index: 2, kind: input, shape index: {}]
  %s3 = inlined_call_operand.hbm [shape: f32[2,16,256], index: 3, kind: output, shape index: {}]
  %s4 = sld [smem:[#allocation0]]
  $region22: #{tpu_custom_call.1} parent=0
    _
  %s6 = ssub.s32 1, %s4
  %s7 = scalar_select 0, %s6, %s4
  $region1: #{tpu_custom_call.1} parent=0
    #allocation2 [shape = 'u8[32768]{0}', space=vmem, size = 0x8000, scoped, tag = 'output window, operand 0, single buffered']
    #allocation3 [shape = 's32[1]{0}', space=sflag, size = 0x4, scoped, tag = 'scoped memory for tpu_custom_call.1']
    %8 = vsyncpa [#allocation3], 0
    // Predicated region
    $region2: #{tpu_custom_call.1} parent=1 // pred_check
      _
    $region3: #{tpu_custom_call.1} parent=1 // pred_check_branch
      %10 = sbr.rel (0) target = $region5
    $region4: #{tpu_custom_call.1} parent=1 // pred_region
      _
    $region5: #{tpu_custom_call.1} parent=1 // pred_fallthru
      _
    // Predicated region
    $region6: #{tpu_custom_call.1} parent=1 // pred_check
      _
    $region7: #{tpu_custom_call.1} parent=1 // pred_check_branch
      %12 = sbr.rel (0) target = $region9
    $region8: #{tpu_custom_call.1} parent=1 // pred_region
      _
    $region9: #{tpu_custom_call.1} parent=1 // pred_fallthru
      _
    // Predicated region
    $region10: #{tpu_custom_call.1} parent=1 // pred_check
      _
    $region11: #{tpu_custom_call.1} parent=1 // pred_check_branch
      %14 = sbr.rel (0) target = $region13
    $region12: #{tpu_custom_call.1} parent=1 // pred_region
      _
    $region13: #{tpu_custom_call.1} parent=1 // pred_fallthru
      _
    %v15 = vld [vmem:[%s0] sm:$0xff]
    %v16 = vld [vmem:[%s0 + $0x8] sm:$0xff]
    %v17 = vld [vmem:[%s0 + $0x10] sm:$0xff]
    %v18 = vld [vmem:[%s0 + $0x18] sm:$0xff]
    %v19 = vld [vmem:[%s0 + $0x20] sm:$0xff]
    %v20 = vld [vmem:[%s0 + $0x28] sm:$0xff]
    %v21 = vld [vmem:[%s0 + $0x30] sm:$0xff]
    %v22 = vld [vmem:[%s0 + $0x38] sm:$0xff]
    %v23 = vld [vmem:[%s0 + $0x40] sm:$0xff]
    %v24 = vld [vmem:[%s0 + $0x48] sm:$0xff]
    %v25 = vld [vmem:[%s0 + $0x50] sm:$0xff]
    %v26 = vld [vmem:[%s0 + $0x58] sm:$0xff]
    %v27 = vld [vmem:[%s0 + $0x60] sm:$0xff]
    %v28 = vld [vmem:[%s0 + $0x68] sm:$0xff]
    %v29 = vld [vmem:[%s0 + $0x70] sm:$0xff]
    %v30 = vld [vmem:[%s0 + $0x78] sm:$0xff]
    %v31 = vld [vmem:[%s0 + $0x80] sm:$0xff]
    %v32 = vld [vmem:[%s0 + $0x88] sm:$0xff]
    %v33 = vld [vmem:[%s0 + $0x90] sm:$0xff]
    %v34 = vld [vmem:[%s0 + $0x98] sm:$0xff]
    %v35 = vld [vmem:[%s0 + $0xa0] sm:$0xff]
    %v36 = vld [vmem:[%s0 + $0xa8] sm:$0xff]
    %v37 = vld [vmem:[%s0 + $0xb0] sm:$0xff]
    %v38 = vld [vmem:[%s0 + $0xb8] sm:$0xff]
    %v39 = vld [vmem:[%s0 + $0xc0] sm:$0xff]
    %v40 = vld [vmem:[%s0 + $0xc8] sm:$0xff]
    %v41 = vld [vmem:[%s0 + $0xd0] sm:$0xff]
    %v42 = vld [vmem:[%s0 + $0xd8] sm:$0xff]
    %v43 = vld [vmem:[%s0 + $0xe0] sm:$0xff]
    %v44 = vld [vmem:[%s0 + $0xe8] sm:$0xff]
    %v45 = vld [vmem:[%s0 + $0xf0] sm:$0xff]
    %v46 = vld [vmem:[%s0 + $0xf8] sm:$0xff]
    %v47 = vld [vmem:[%s0 + $0x100] sm:$0xff]
    %v48 = vld [vmem:[%s0 + $0x108] sm:$0xff]
    %v49 = vld [vmem:[%s0 + $0x110] sm:$0xff]
    %v50 = vld [vmem:[%s0 + $0x118] sm:$0xff]
    %v51 = vld [vmem:[%s0 + $0x120] sm:$0xff]
    %v52 = vld [vmem:[%s0 + $0x128] sm:$0xff]
    %v53 = vld [vmem:[%s0 + $0x130] sm:$0xff]
    %v54 = vld [vmem:[%s0 + $0x138] sm:$0xff]
    %v55 = vld [vmem:[%s0 + $0x140] sm:$0xff]
    %v56 = vld [vmem:[%s0 + $0x148] sm:$0xff]
    %v57 = vld [vmem:[%s0 + $0x150] sm:$0xff]
    %v58 = vld [vmem:[%s0 + $0x158] sm:$0xff]
    %v59 = vld [vmem:[%s0 + $0x160] sm:$0xff]
    %v60 = vld [vmem:[%s0 + $0x168] sm:$0xff]
    %v61 = vld [vmem:[%s0 + $0x170] sm:$0xff]
    %v62 = vld [vmem:[%s0 + $0x178] sm:$0xff]
    %v63 = vld [vmem:[%s0 + $0x180] sm:$0xff]
    %v64 = vld [vmem:[%s0 + $0x188] sm:$0xff]
    %v65 = vld [vmem:[%s0 + $0x190] sm:$0xff]
    %v66 = vld [vmem:[%s0 + $0x198] sm:$0xff]
    %v67 = vld [vmem:[%s0 + $0x1a0] sm:$0xff]
    %v68 = vld [vmem:[%s0 + $0x1a8] sm:$0xff]
    %v69 = vld [vmem:[%s0 + $0x1b0] sm:$0xff]
    %v70 = vld [vmem:[%s0 + $0x1b8] sm:$0xff]
    %v71 = vld [vmem:[%s0 + $0x1c0] sm:$0xff]
    %v72 = vld [vmem:[%s0 + $0x1c8] sm:$0xff]
    %v73 = vld [vmem:[%s0 + $0x1d0] sm:$0xff]
    %v74 = vld [vmem:[%s0 + $0x1d8] sm:$0xff]
    %v75 = vld [vmem:[%s0 + $0x1e0] sm:$0xff]
    %v76 = vld [vmem:[%s0 + $0x1e8] sm:$0xff]
    %v77 = vld [vmem:[%s0 + $0x1f0] sm:$0xff]
    %v78 = vld [vmem:[%s0 + $0x1f8] sm:$0xff]
    %79 = vxpose.xlu0.b32.start [1/16] %v15, 128
    %80 = vxpose.xlu0.b32.cont [2/16] %v16, 128
    %81 = vxpose.xlu0.b32.cont [3/16] %v17, 128
    %82 = vxpose.xlu0.b32.cont [4/16] %v18, 128
    %83 = vxpose.xlu0.b32.cont [5/16] %v19, 128
    %84 = vxpose.xlu0.b32.cont [6/16] %v20, 128
    %85 = vxpose.xlu0.b32.cont [7/16] %v21, 128
    %86 = vxpose.xlu0.b32.cont [8/16] %v22, 128
    %87 = vxpose.xlu0.b32.cont [9/16] %v23, 128
    %88 = vxpose.xlu0.b32.cont [10/16] %v24, 128
    %89 = vxpose.xlu0.b32.cont [11/16] %v25, 128
    %90 = vxpose.xlu0.b32.cont [12/16] %v26, 128
    %91 = vxpose.xlu0.b32.cont [13/16] %v27, 128
    %92 = vxpose.xlu0.b32.cont [14/16] %v28, 128
    %93 = vxpose.xlu0.b32.cont [15/16] %v29, 128
    %94 = vxpose.xlu0.b32.end [16/16] %v30, 128
    %v95 = vpop.trf.xlu0
    %v96 = vpop.trf.xlu0
    %v97 = vpop.trf.xlu0
    %v98 = vpop.trf.xlu0
    %v99 = vpop.trf.xlu0
    %v100 = vpop.trf.xlu0
    %v101 = vpop.trf.xlu0
    %v102 = vpop.trf.xlu0
    %v103 = vpop.trf.xlu0
    %v104 = vpop.trf.xlu0
    %v105 = vpop.trf.xlu0
    %v106 = vpop.trf.xlu0
    %v107 = vpop.trf.xlu0
    %v108 = vpop.trf.xlu0
    %v109 = vpop.trf.xlu0
    %v110 = vpop.trf.xlu0
    %111 = vxpose.xlu0.b32.start [1/16] %v31, 128
    %112 = vxpose.xlu0.b32.cont [2/16] %v32, 128
    %113 = vxpose.xlu0.b32.cont [3/16] %v33, 128
    %114 = vxpose.xlu0.b32.cont [4/16] %v34, 128
    %115 = vxpose.xlu0.b32.cont [5/16] %v35, 128
    %116 = vxpose.xlu0.b32.cont [6/16] %v36, 128
    %117 = vxpose.xlu0.b32.cont [7/16] %v37, 128
    %118 = vxpose.xlu0.b32.cont [8/16] %v38, 128
    %119 = vxpose.xlu0.b32.cont [9/16] %v39, 128
    %120 = vxpose.xlu0.b32.cont [10/16] %v40, 128
    %121 = vxpose.xlu0.b32.cont [11/16] %v41, 128
    %122 = vxpose.xlu0.b32.cont [12/16] %v42, 128
    %123 = vxpose.xlu0.b32.cont [13/16] %v43, 128
    %124 = vxpose.xlu0.b32.cont [14/16] %v44, 128
    %125 = vxpose.xlu0.b32.cont [15/16] %v45, 128
    %126 = vxpose.xlu0.b32.end [16/16] %v46, 128
    %v127 = vpop.trf.xlu0
    %v128 = vpop.trf.xlu0
    %v129 = vpop.trf.xlu0
    %v130 = vpop.trf.xlu0
    %v131 = vpop.trf.xlu0
    %v132 = vpop.trf.xlu0
    %v133 = vpop.trf.xlu0
    %v134 = vpop.trf.xlu0
    %v135 = vpop.trf.xlu0
    %v136 = vpop.trf.xlu0
    %v137 = vpop.trf.xlu0
    %v138 = vpop.trf.xlu0
    %v139 = vpop.trf.xlu0
    %v140 = vpop.trf.xlu0
    %v141 = vpop.trf.xlu0
    %v142 = vpop.trf.xlu0
    %143 = vxpose.xlu0.b32.start [1/16] %v47, 128
    %144 = vxpose.xlu0.b32.cont [2/16] %v48, 128
    %145 = vxpose.xlu0.b32.cont [3/16] %v49, 128
    %146 = vxpose.xlu0.b32.cont [4/16] %v50, 128
    %147 = vxpose.xlu0.b32.cont [5/16] %v51, 128
    %148 = vxpose.xlu0.b32.cont [6/16] %v52, 128
    %149 = vxpose.xlu0.b32.cont [7/16] %v53, 128
    %150 = vxpose.xlu0.b32.cont [8/16] %v54, 128
    %151 = vxpose.xlu0.b32.cont [9/16] %v55, 128
    %152 = vxpose.xlu0.b32.cont [10/16] %v56, 128
    %153 = vxpose.xlu0.b32.cont [11/16] %v57, 128
    %154 = vxpose.xlu0.b32.cont [12/16] %v58, 128
    %155 = vxpose.xlu0.b32.cont [13/16] %v59, 128
    %156 = vxpose.xlu0.b32.cont [14/16] %v60, 128
    %157 = vxpose.xlu0.b32.cont [15/16] %v61, 128
    %158 = vxpose.xlu0.b32.end [16/16] %v62, 128
    %v159 = vpop.trf.xlu0
    %v160 = vpop.trf.xlu0
    %v161 = vpop.trf.xlu0
    %v162 = vpop.trf.xlu0
    %v163 = vpop.trf.xlu0
    %v164 = vpop.trf.xlu0
    %v165 = vpop.trf.xlu0
    %v166 = vpop.trf.xlu0
    %v167 = vpop.trf.xlu0
    %v168 = vpop.trf.xlu0
    %v169 = vpop.trf.xlu0
    %v170 = vpop.trf.xlu0
    %v171 = vpop.trf.xlu0
    %v172 = vpop.trf.xlu0
    %v173 = vpop.trf.xlu0
    %v174 = vpop.trf.xlu0
    %175 = vxpose.xlu0.b32.start [1/16] %v63, 128
    %176 = vxpose.xlu0.b32.cont [2/16] %v64, 128
    %177 = vxpose.xlu0.b32.cont [3/16] %v65, 128
    %178 = vxpose.xlu0.b32.cont [4/16] %v66, 128
    %179 = vxpose.xlu0.b32.cont [5/16] %v67, 128
    %180 = vxpose.xlu0.b32.cont [6/16] %v68, 128
    %181 = vxpose.xlu0.b32.cont [7/16] %v69, 128
    %182 = vxpose.xlu0.b32.cont [8/16] %v70, 128
    %183 = vxpose.xlu0.b32.cont [9/16] %v71, 128
    %184 = vxpose.xlu0.b32.cont [10/16] %v72, 128
    %185 = vxpose.xlu0.b32.cont [11/16] %v73, 128
    %186 = vxpose.xlu0.b32.cont [12/16] %v74, 128
    %187 = vxpose.xlu0.b32.cont [13/16] %v75, 128
    %188 = vxpose.xlu0.b32.cont [14/16] %v76, 128
    %189 = vxpose.xlu0.b32.cont [15/16] %v77, 128
    %190 = vxpose.xlu0.b32.end [16/16] %v78, 128
    %v191 = vpop.trf.xlu0
    %v192 = vpop.trf.xlu0
    %v193 = vpop.trf.xlu0
    %v194 = vpop.trf.xlu0
    %v195 = vpop.trf.xlu0
    %v196 = vpop.trf.xlu0
    %v197 = vpop.trf.xlu0
    %v198 = vpop.trf.xlu0
    %v199 = vpop.trf.xlu0
    %v200 = vpop.trf.xlu0
    %v201 = vpop.trf.xlu0
    %v202 = vpop.trf.xlu0
    %v203 = vpop.trf.xlu0
    %v204 = vpop.trf.xlu0
    %v205 = vpop.trf.xlu0
    %v206 = vpop.trf.xlu0
    %v207 = vld [vmem:[%s1] sm:$0x3]
    %v208 = vld [vmem:[%s1 + $0x2] sm:$0x3]
    %v211 = vlaneseq
    %v212 = vshrl.u32 %v211, 7
    %v213 = vsub.s32 0, %v212
    %v214 = vrot.slane %v207, %v213
    %v215 = vlaneseq
    %v216 = vshrl.u32 %v215, 7
    %v217 = vsub.s32 1, %v216
    %v218 = vrot.slane %v207, %v217
    %v219 = vlaneseq
    %v220 = vshrl.u32 %v219, 7
    %v221 = vsub.s32 0, %v220
    %v222 = vrot.slane %v208, %v221
    %v223 = vlaneseq
    %v224 = vshrl.u32 %v223, 7
    %v225 = vsub.s32 1, %v224
    %v226 = vrot.slane %v208, %v225
    %v231 = vmul.f32 %v95, %v214
    %v232 = vmul.f32 %v127, %v218
    %v233 = vmul.f32 %v96, %v214
    %v234 = vmul.f32 %v128, %v218
    %v235 = vmul.f32 %v159, %v222
    %v236 = vmul.f32 %v191, %v226
    %v237 = vmul.f32 %v160, %v222
    %v238 = vmul.f32 %v192, %v226
    %v239 = vld [vmem:[%s2] sm:$0x3]
    %v240 = vld [vmem:[%s2 + $0x2] sm:$0x3]
    %v243 = vlaneseq
    %v244 = vshrl.u32 %v243, 7
    %v245 = vsub.s32 0, %v244
    %v246 = vrot.slane %v239, %v245
    %v247 = vlaneseq
    %v248 = vshrl.u32 %v247, 7
    %v249 = vsub.s32 1, %v248
    %v250 = vrot.slane %v239, %v249
    %v251 = vlaneseq
    %v252 = vshrl.u32 %v251, 7
    %v253 = vsub.s32 0, %v252
    %v254 = vrot.slane %v240, %v253
    %v255 = vlaneseq
    %v256 = vshrl.u32 %v255, 7
    %v257 = vsub.s32 1, %v256
    %v258 = vrot.slane %v240, %v257
    %v263 = vadd.f32 %v231, %v246
    %v264 = vadd.f32 %v232, %v250
    %v265 = vadd.f32 %v233, %v246
    %v266 = vadd.f32 %v234, %v250
    %v267 = vadd.f32 %v235, %v254
    %v268 = vadd.f32 %v236, %v258
    %v269 = vadd.f32 %v237, %v254
    %v270 = vadd.f32 %v238, %v258
    %271 = vst [vmem:[#allocation2] sm:$0xff] %v263
    %272 = vst [vmem:[#allocation2 + $0x8] sm:$0xff] %v264
    %273 = vst [vmem:[#allocation2 + $0x10] sm:$0xff] %v265
    %274 = vst [vmem:[#allocation2 + $0x18] sm:$0xff] %v266
    %275 = vst [vmem:[#allocation2 + $0x20] sm:$0xff] %v267
    %276 = vst [vmem:[#allocation2 + $0x28] sm:$0xff] %v268
    %277 = vst [vmem:[#allocation2 + $0x30] sm:$0xff] %v269
    %278 = vst [vmem:[#allocation2 + $0x38] sm:$0xff] %v270
    // Predicated region
    $region14: #{tpu_custom_call.1} parent=1 // pred_check
      _
    $region15: #{tpu_custom_call.1} parent=1 // pred_check_branch
      %280 = sbr.rel (0) target = $region17
    $region16: #{tpu_custom_call.1} parent=1 // pred_region
      %s282 = ssub.s32 1024, 1024
      %283 = vsyncadd [#allocation3], %s282
      %s284 = sshll.u32 [#allocation2], 4
      %s285 = int_to_ptr.vmem [resolvable:$true] %s284
      %290 = dma.vmem_to_hbm [thread:$0]  %s285, 1024, %s3, [#allocation3], 256, 256, 16
    $region17: #{tpu_custom_call.1} parent=1 // pred_fallthru
      _
    // Predicated region
    $region18: #{tpu_custom_call.1} parent=1 // pred_check
      _
    $region19: #{tpu_custom_call.1} parent=1 // pred_check_branch
      %292 = sbr.rel (0) target = $region21
    $region20: #{tpu_custom_call.1} parent=1 // pred_region
      %293 = dma.done [#allocation3], 1024
    $region21: #{tpu_custom_call.1} parent=1 // pred_fallthru
      _
    %294 = vsyncpa [#allocation3], 1

</llo_original>
